<compile_context>
chip_gen: v7x
topology: tpu7x:2x2x1
jax: 0.10.0
libtpu: 0.0.40
codegen_flags: <defaults>
</compile_context>

<pallas_src>
import jax
import jax.numpy as jnp
from jax.experimental import pallas as pl
from jax.experimental.pallas import tpu as pltpu


_LANES = 512          # lane-dense last dim (multiple of 128)
_MAX_TILE_ROWS = 512  # 512 x 512 f32 = 1 MiB per input tile


# ----------------------------- Pallas kernel ------------------------------ #
def _ds_kernel(scale_ref, x_ref, y_ref, o_ref, acc_ref):
    """One grid step = one (tile_r, LANES) chunk belonging to a single DS level.

    scale_ref : SMEM f32[num_chunks]        per-chunk weight_i / n_elem_i
    x_ref/y_ref: VMEM (tile_r, LANES) tiles (auto double-buffered by BlockSpec)
    o_ref     : SMEM (1, 1)                 final weighted loss
    acc_ref   : VMEM (tile_r, LANES) f32    vector accumulator carried across grid
    """
    i = pl.program_id(0)

    @pl.when(i == 0)
    def _():
        acc_ref[...] = jnp.zeros_like(acc_ref)

    d = x_ref[...].astype(jnp.float32) - y_ref[...].astype(jnp.float32)
    # weight_i / n_i folded in per chunk; zero-padded tails contribute exactly 0.
    acc_ref[...] += scale_ref[i] * (d * d)

    @pl.when(i == pl.num_programs(0) - 1)
    def _():
        o_ref[0, 0] = jnp.sum(acc_ref[...])   # single epilogue XLU reduce


# ------------------------- fused wrapper (one launch) ---------------------- #
def _fused_weighted_mse(xs, ys, weights):
    """sum_i weights[i] * mean((xs[i]-ys[i])**2) in a single pallas_call.

    Matches MultipleOutputLoss2.forward with an MSE inner loss: level 0 always
    contributes; levels i > 0 contribute only if weights[i] != 0.
    """
    assert len(xs) == len(ys) and len(xs) >= 1
    active = [0] + [i for i in range(1, len(xs)) if weights[i] != 0]
    for i in active:
        assert xs[i].shape == ys[i].shape, (xs[i].shape, ys[i].shape)

    in_dtype = jnp.result_type(*([xs[i].dtype for i in active] +
                                 [ys[i].dtype for i in active]))

    # Tile sizing: lane-dense 512-wide rows; row count adapted to problem size
    # (tiny pyramids -> tiny tiles, realistic nnU-Net outputs -> 1 MiB tiles).
    max_elems = max(xs[i].size for i in active)
    rows_needed = -(-max_elems // _LANES)
    tile_r = max(8, min(_MAX_TILE_ROWS, ((rows_needed + 7) // 8) * 8))
    chunk = tile_r * _LANES

    x_parts, y_parts, scale_list = [], [], []
    for i in active:
        n = xs[i].size
        n_chunks = max(1, -(-n // chunk))
        pad = n_chunks * chunk - n
        xf = xs[i].reshape(-1).astype(in_dtype)
        yf = ys[i].reshape(-1).astype(in_dtype)
        if pad:
            xf = jnp.pad(xf, (0, pad))
            yf = jnp.pad(yf, (0, pad))
        x_parts.append(xf)
        y_parts.append(yf)
        scale_list.extend([float(weights[i]) / float(n)] * n_chunks)

    x2 = jnp.concatenate(x_parts).reshape(-1, _LANES)
    y2 = jnp.concatenate(y_parts).reshape(-1, _LANES)
    scales = jnp.asarray(scale_list, dtype=jnp.float32)
    total_chunks = len(scale_list)

    out = pl.pallas_call(
        _ds_kernel,
        out_shape=jax.ShapeDtypeStruct((1, 1), jnp.float32),
        grid=(total_chunks,),
        in_specs=[
            pl.BlockSpec(memory_space=pltpu.SMEM),                 # per-chunk scales
            pl.BlockSpec((tile_r, _LANES), lambda i: (i, 0)),      # x tiles
            pl.BlockSpec((tile_r, _LANES), lambda i: (i, 0)),      # y tiles
        ],
        out_specs=pl.BlockSpec((1, 1), lambda i: (0, 0),
                               memory_space=pltpu.SMEM),
        scratch_shapes=[pltpu.VMEM((tile_r, _LANES), jnp.float32)],
        compiler_params=pltpu.CompilerParams(
            dimension_semantics=("arbitrary",)),                   # carried reduction
    )(scales, x2, y2)
    return out[0, 0]


def mse_loss_pallas(x, y):
    """MSE loss (reduction='mean') for one (pred, target) pair via the Pallas kernel."""
    return _fused_weighted_mse([x], [y], [1.0])


# ------------------------ MultipleOutputLoss2 port ------------------------ #
class MultipleOutputLoss2:
    """JAX/Pallas port of nnunetv2 MultipleOutputLoss2 (weighted deep-supervision loss).

    If `loss` is None or the built-in `mse_loss_pallas`, ALL deep-supervision
    levels are fused into one pallas_call (one launch, one continuous DMA
    pipeline, weights and per-level 1/N folded into the kernel).  Any other
    user-injected callable falls back to the original per-level loop with
    identical semantics to the PyTorch module.
    """

    def __init__(self, loss=None, weight_factors=None):
        self.weight_factors = weight_factors
        self.loss = loss

    def __call__(self, x, y):
        assert isinstance(x, (tuple, list)), 'x must be either tuple or list'
        assert isinstance(y, (tuple, list)), 'y must be either tuple or list'
        if self.weight_factors is None:
            weights = [1] * len(x)
        else:
            weights = self.weight_factors
        if self.loss is None or self.loss is mse_loss_pallas:
            return _fused_weighted_mse(list(x), list(y), list(weights))
        # Generic fallback: arbitrary injected loss, per-level (matches torch loop).
        l = weights[0] * self.loss(x[0], y[0])
        for i in range(1, len(x)):
            if weights[i] != 0:
                l = l + weights[i] * self.loss(x[i], y[i])
        return l


# --------------------------------- main ----------------------------------- #
if __name__ == "__main__":
    key = jax.random.PRNGKey(0)

    # Deep-supervision pyramid: 3 scales, NCHW, halved spatial size each level.
    shapes = [(2, 4, 16, 16), (2, 4, 8, 8), (2, 4, 4, 4)]
    weights = [1.0, 0.5, 0.25]

    xs, ys = [], []
    for s in shapes:
        key, kx, ky = jax.random.split(key, 3)
        xs.append(jax.random.normal(kx, s, dtype=jnp.float32))
        ys.append(jax.random.normal(ky, s, dtype=jnp.float32))

    ds_loss = MultipleOutputLoss2(mse_loss_pallas, weight_factors=weights)
    out = jax.block_until_ready(ds_loss(xs, ys))

    # Pure-JAX reference check (same skip-zero-weight semantics as the module).
    ref = sum(w * jnp.mean((a - b) ** 2)
              for w, a, b in zip(weights, xs, ys) if w != 0)
    assert jnp.allclose(out, ref, rtol=1e-5, atol=1e-5), (out, ref)

    print("KERNEL_OK")
</pallas_src>

<mosaic_0001>
module attributes {stable_mosaic.version = 11 : i64} {
  func.func @_ds_kernel(%arg0: i32, %arg1: memref<3xf32, #tpu.memory_space<smem>>, %arg2: memref<8x512xf32, #tpu.memory_space<vmem>>, %arg3: memref<8x512xf32, #tpu.memory_space<vmem>>, %arg4: memref<1x1xf32, #tpu.memory_space<smem>>, %arg5: memref<8x512xf32, #tpu.memory_space<vmem>>) attributes {dimension_semantics = [#tpu.dimension_semantics<arbitrary>], iteration_bounds = array<i64: 3>, scalar_prefetch = 0 : i64, scratch_operands = 1 : i64, tpu.core_type = #tpu.core_type<tc>, window_params = [{transform_indices = @transform_0, window_bounds = array<i64: 3>}, {transform_indices = @transform_1, window_bounds = array<i64: 8, 512>}, {transform_indices = @transform_2, window_bounds = array<i64: 8, 512>}, {transform_indices = @transform_3, window_bounds = array<i64: 1, 1>}]} {
    %c0_i32 = arith.constant 0 : i32
    %0 = arith.cmpi eq, %arg0, %c0_i32 : i32
    %1 = arith.extui %0 : i1 to i32
    %c0_i32_0 = arith.constant 0 : i32
    %2 = arith.cmpi ne, %1, %c0_i32_0 : i32
    scf.if %2 {
      %cst = arith.constant 0.000000e+00 : f32
      %17 = vector.broadcast %cst : f32 to vector<8x512xf32>
      %c0_9 = arith.constant 0 : index
      %c0_10 = arith.constant 0 : index
      %18 = vector.load %arg5[%c0_9, %c0_10] : memref<8x512xf32, #tpu.memory_space<vmem>>, vector<8x512xf32>
      tpu.vector_store %arg5[%c0_9, %c0_10], %17 {strides = array<i32>} : memref<8x512xf32, #tpu.memory_space<vmem>>, vector<8x512xf32>,
    } else {
    }
    %c0 = arith.constant 0 : index
    %c0_1 = arith.constant 0 : index
    %3 = vector.load %arg2[%c0, %c0_1] : memref<8x512xf32, #tpu.memory_space<vmem>>, vector<8x512xf32>
    %c0_2 = arith.constant 0 : index
    %c0_3 = arith.constant 0 : index
    %4 = vector.load %arg3[%c0_2, %c0_3] : memref<8x512xf32, #tpu.memory_space<vmem>>, vector<8x512xf32>
    %5 = arith.subf %3, %4 : vector<8x512xf32>
    %c0_4 = arith.constant 0 : index
    %c0_5 = arith.constant 0 : index
    %6 = vector.load %arg5[%c0_4, %c0_5] : memref<8x512xf32, #tpu.memory_space<vmem>>, vector<8x512xf32>
    %7 = arith.index_cast %arg0 : i32 to index
    %8 = memref.load %arg1[%7] : memref<3xf32, #tpu.memory_space<smem>>
    %9 = arith.mulf %5, %5 : vector<8x512xf32>
    %10 = vector.broadcast %8 : f32 to vector<8x512xf32>
    %11 = arith.mulf %10, %9 : vector<8x512xf32>
    %12 = arith.addf %6, %11 : vector<8x512xf32>
    %c0_6 = arith.constant 0 : index
    %c0_7 = arith.constant 0 : index
    %13 = vector.load %arg5[%c0_6, %c0_7] : memref<8x512xf32, #tpu.memory_space<vmem>>, vector<8x512xf32>
    tpu.vector_store %arg5[%c0_6, %c0_7], %12 {strides = array<i32>} : memref<8x512xf32, #tpu.memory_space<vmem>>, vector<8x512xf32>,
    %c2_i32 = arith.constant 2 : i32
    %14 = arith.cmpi eq, %arg0, %c2_i32 : i32
    %15 = arith.extui %14 : i1 to i32
    %c0_i32_8 = arith.constant 0 : i32
    %16 = arith.cmpi ne, %15, %c0_i32_8 : i32
    scf.if %16 {
      %c0_9 = arith.constant 0 : index
      %c0_10 = arith.constant 0 : index
      %17 = vector.load %arg5[%c0_9, %c0_10] : memref<8x512xf32, #tpu.memory_space<vmem>>, vector<8x512xf32>
      %18 = vector.shape_cast %17 : vector<8x512xf32> to vector<1x8x512xf32>
      %cst = arith.constant dense<0.000000e+00> : vector<1xf32>
      %19 = vector.multi_reduction <add>, %18, %cst [1, 2] : vector<1x8x512xf32> to vector<1xf32>
      %20 = vector.shape_cast %19 : vector<1xf32> to vector<1x1x1xf32>
      %21 = vector.extract %20[0, 0, 0] : f32 from vector<1x1x1xf32>
      %c0_11 = arith.constant 0 : index
      %c0_12 = arith.constant 0 : index
      %22 = memref.load %arg4[%c0_11, %c0_12] : memref<1x1xf32, #tpu.memory_space<smem>>
      memref.store %21, %arg4[%c0_11, %c0_12] : memref<1x1xf32, #tpu.memory_space<smem>>
    } else {
    }
    return
  }
  func.func @transform_0(%arg0: i32) -> i32 {
    %c0_i32 = arith.constant 0 : i32
    %c0_i32_0 = arith.constant 0 : i32
    return %c0_i32 : i32
  }
  func.func @transform_1(%arg0: i32) -> (i32, i32) {
    %c0_i32 = arith.constant 0 : i32
    %c0_i32_0 = arith.constant 0 : i32
    return %arg0, %c0_i32 : i32, i32
  }
  func.func @transform_2(%arg0: i32) -> (i32, i32) {
    %c0_i32 = arith.constant 0 : i32
    %c0_i32_0 = arith.constant 0 : i32
    return %arg0, %c0_i32 : i32, i32
  }
  func.func @transform_3(%arg0: i32) -> (i32, i32) {
    %c0_i32 = arith.constant 0 : i32
    %c0_i32_0 = arith.constant 0 : i32
    %c0_i32_1 = arith.constant 0 : i32
    return %c0_i32, %c0_i32_0 : i32, i32
  }
}

</mosaic_0001>

<llo_original>
// kernel: tpu_custom_call.1
$region0: #{tpu_custom_call.1}
  #allocation0 [shape = 'u32[]', space=smem, size = 0x4, offset = 0x4, fixed_abs, tag = 'smem constant byte address 0x4 - core index']
  #allocation1 [shape = 'u32[144,128]{1,0:T(1,128)}', space=vmem, size = 0x12000, scoped, tag = 'internal scratch']
  #allocation2 [shape = 'f32[8,512]{1,0:T(8,128)}', space=vmem, size = 0x4000, scoped, tag = 'scratch operand']
  %s0 = inlined_call_operand.hbm [shape: f32[3], index: 0, kind: input, shape index: {}]
  %s1 = inlined_call_operand.hbm [shape: f32[24,512], index: 1, kind: input, shape index: {}]
  %s2 = inlined_call_operand.hbm [shape: f32[24,512], index: 2, kind: input, shape index: {}]
  %s3 = inlined_call_operand.hbm [shape: f32[1,1], index: 3, kind: output, shape index: {}]
  %s4 = sld [smem:[#allocation0]]
  $region65: #{tpu_custom_call.1} parent=0
    _
  %s6 = ssub.s32 1, %s4
  %s7 = scalar_select 0, %s6, %s4
  $region1: #{tpu_custom_call.1} parent=0
    #allocation3 [shape = 'u8[512]{0}', space=smem, size = 0x200, scoped, tag = 'input window, operand 0, single buffered']
    #allocation4 [shape = 's32[2]{0}', space=sflag, size = 0x8, scoped, tag = 'scoped memory for tpu_custom_call.1']
    #allocation5 [shape = 's32[2]{0}', space=sflag, size = 0x8, scoped, tag = 'scoped memory for tpu_custom_call.1']
    #allocation6 [shape = 's32[2]{0}', space=sflag, size = 0x8, scoped, tag = 'scoped memory for tpu_custom_call.1']
    #allocation7 [shape = 'u8[32768]{0}', space=vmem, size = 0x8000, scoped, tag = 'input window, operand 1']
    #allocation8 [shape = 'u8[32768]{0}', space=vmem, size = 0x8000, scoped, tag = 'input window, operand 2']
    #allocation9 [shape = 's32[2]{0}', space=sflag, size = 0x8, scoped, tag = 'scoped memory for tpu_custom_call.1']
    #allocation10 [shape = 'u8[512]{0}', space=smem, size = 0x200, scoped, tag = 'output window, operand 0, single buffered']
    %8 = vsyncpa [#allocation5], 0
    %9 = vsyncpa [#allocation4], 0
    %s10 = scalar_lea.sflag [#allocation4], 1
    %11 = vsyncpa %s10, 0
    %12 = vsyncpa [#allocation9], 0
    %s13 = scalar_lea.sflag [#allocation9], 1
    %14 = vsyncpa %s13, 0
    %15 = vsyncpa [#allocation6], 0
    loop: start=0, step=1, limit=5
    $region2: #{tpu_custom_call.1} parent=1 // loop_pre_header
      _
    $region3: #{tpu_custom_call.1} parent=1 // loop_header
      %s17 = sphi 0, %s21
      %p18 = scmp.ge.s32.totalorder %s17, 5
      %s25 = sphi 0, %s25
      %s27 = sphi 0, %s25
      %s28 = sphi 0, %s27
      %s42 = sphi 0, %s28
      %s48 = sphi 0, %s50
      %s51 = sphi 0, %s48
      %s52 = sphi 0, %s51
      %s68 = sphi 0, %s52
      %s74 = sphi 0, %s76
      %s77 = sphi 0, %s74
      %s78 = sphi 0, %s77
      %s94 = sphi 0, %s78
      %s98 = sphi 0, %s98
      %s100 = sphi 0, %s98
      %s101 = sphi 0, %s100
      %s115 = sphi 0, %s101
    $region4: #{tpu_custom_call.1} parent=1 // loop_header_branch
      %20 = sbr.rel (%p18) target = $region8
    $region5: #{tpu_custom_call.1} parent=1 // loop_body
      %s22 = ssub.s32 %s17, 1
      %s23 = ssub.s32 %s17, 2
      %s24 = sadd.s32 %s17, 1
      %s26 = sadd.s32 %s25, 1
      %p29 = scmp.eq.s32.totalorder %s17, 2
      %p30 = scmp.ne.s32.totalorder %s25, %s27
      %p31 = scmp.eq.s32.totalorder %s17, 0
      %p32 = por %p30, %p31
      %p33 = scmp.ne.s32.totalorder %s25, %s27
      %p34 = scmp.eq.s32.totalorder %s22, 2
      %p35 = por %p33, %p34
      %p36 = scmp.ne.s32.totalorder %s27, %s28
      %p37 = scmp.eq.s32.totalorder %s22, 0
      %p38 = por %p36, %p37
      %p39 = scmp.ne.s32.totalorder %s27, %s28
      %p40 = scmp.eq.s32.totalorder %s23, 2
      %p41 = por %p39, %p40
      %p43 = scmp.ne.s32.totalorder %s28, %s42
      %p44 = scmp.eq.s32.totalorder %s23, 0
      %p45 = por %p43, %p44
      %s46 = ssub.s32 %s17, %s24
      %p47 = scmp.eq.s32.totalorder %s46, 0
      %s49 = sadd.s32 %s48, 1
      %s50 = scalar_select %p47, %s48, %s49
      %p53 = pneg %p47
      %p54 = scmp.eq.s32.totalorder %s17, 2
      %p55 = por %p53, %p54
      %p56 = scmp.ne.s32.totalorder %s48, %s51
      %p57 = scmp.eq.s32.totalorder %s17, 0
      %p58 = por %p56, %p57
      %p59 = scmp.ne.s32.totalorder %s48, %s51
      %p60 = scmp.eq.s32.totalorder %s22, 2
      %p61 = por %p59, %p60
      %p62 = scmp.ne.s32.totalorder %s51, %s52
      %p63 = scmp.eq.s32.totalorder %s22, 0
      %p64 = por %p62, %p63
      %p65 = scmp.ne.s32.totalorder %s51, %s52
      %p66 = scmp.eq.s32.totalorder %s23, 2
      %p67 = por %p65, %p66
      %p69 = scmp.ne.s32.totalorder %s52, %s68
      %p70 = scmp.eq.s32.totalorder %s23, 0
      %p71 = por %p69, %p70
      %s72 = ssub.s32 %s17, %s24
      %p73 = scmp.eq.s32.totalorder %s72, 0
      %s75 = sadd.s32 %s74, 1
      %s76 = scalar_select %p73, %s74, %s75
      %p79 = pneg %p73
      %p80 = scmp.eq.s32.totalorder %s17, 2
      %p81 = por %p79, %p80
      %p82 = scmp.ne.s32.totalorder %s74, %s77
      %p83 = scmp.eq.s32.totalorder %s17, 0
      %p84 = por %p82, %p83
      %p85 = scmp.ne.s32.totalorder %s74, %s77
      %p86 = scmp.eq.s32.totalorder %s22, 2
      %p87 = por %p85, %p86
      %p88 = scmp.ne.s32.totalorder %s77, %s78
      %p89 = scmp.eq.s32.totalorder %s22, 0
      %p90 = por %p88, %p89
      %p91 = scmp.ne.s32.totalorder %s77, %s78
      %p92 = scmp.eq.s32.totalorder %s23, 2
      %p93 = por %p91, %p92
      %p95 = scmp.ne.s32.totalorder %s78, %s94
      %p96 = scmp.eq.s32.totalorder %s23, 0
      %p97 = por %p95, %p96
      %s99 = sadd.s32 %s98, 1
      %p102 = scmp.eq.s32.totalorder %s17, 2
      %p103 = scmp.ne.s32.totalorder %s98, %s100
      %p104 = scmp.eq.s32.totalorder %s17, 0
      %p105 = por %p103, %p104
      %p106 = scmp.ne.s32.totalorder %s98, %s100
      %p107 = scmp.eq.s32.totalorder %s22, 2
      %p108 = por %p106, %p107
      %p109 = scmp.ne.s32.totalorder %s100, %s101
      %p110 = scmp.eq.s32.totalorder %s22, 0
      %p111 = por %p109, %p110
      %p112 = scmp.ne.s32.totalorder %s100, %s101
      %p113 = scmp.eq.s32.totalorder %s23, 2
      %p114 = por %p112, %p113
      %p116 = scmp.ne.s32.totalorder %s101, %s115
      %p117 = scmp.eq.s32.totalorder %s23, 0
      %p118 = por %p116, %p117
      %p119 = scmp.le.s32.totalorder 1, %s17
      %p120 = scmp.lt.s32.totalorder %s17, 4
      %p121 = pnand %p119, %p120
      %p122 = pneg %p121
      // Predicated region
      $region9: #{tpu_custom_call.1} parent=5 // pred_check
        _
      $region10: #{tpu_custom_call.1} parent=5 // pred_check_branch
        %124 = sbr.rel (%p121) target = $region12
      $region11: #{tpu_custom_call.1} parent=5 // pred_region
        %s125 = ssub.s32 %s17, 1
        // Predicated region
        $region13: #{tpu_custom_call.1} parent=11 // pred_check
          %p126 = pneg %p38
        $region14: #{tpu_custom_call.1} parent=11 // pred_check_branch
          %128 = sbr.rel (%p126) target = $region16
        $region15: #{tpu_custom_call.1} parent=11 // pred_region
          %s130 = ssub.s32 16, 16
          %131 = vsyncadd [#allocation5], %s130
          %134 = dma.hbm_to_smem %s0, 16, [#allocation3], [#allocation5]
        $region16: #{tpu_custom_call.1} parent=11 // pred_fallthru
          _
      $region12: #{tpu_custom_call.1} parent=5 // pred_fallthru
        _
      %p135 = scmp.lt.s32.totalorder %s17, 3
      // Predicated region
      $region17: #{tpu_custom_call.1} parent=5 // pred_check
        %p136 = pneg %p135
      $region18: #{tpu_custom_call.1} parent=5 // pred_check_branch
        %138 = sbr.rel (%p136) target = $region20
      $region19: #{tpu_custom_call.1} parent=5 // pred_region
        // Predicated region
        $region21: #{tpu_custom_call.1} parent=19 // pred_check
          %p139 = pneg %p58
        $region22: #{tpu_custom_call.1} parent=19 // pred_check_branch
          %141 = sbr.rel (%p139) target = $region24
        $region23: #{tpu_custom_call.1} parent=19 // pred_region
          %s142 = sand.u32 %s48, 1
          %s143 = scalar_lea.sflag [#allocation4], %s142
          %s144 = sand.u32 %s48, 1
          %s145 = smul.addr %s144, 32
          %s146 = scalar_lea.vmem [#allocation7], %s145
          %s148 = ssub.s32 512, 512
          %149 = vsyncadd %s143, %s148
          %s150 = smul.addr %s17, 4
          %s151 = smul.addr %s150, 128
          %s152 = scalar_lea.hbm %s1, %s151
          %s154 = sshll.u32 %s146, 4
          %s155 = int_to_ptr.vmem [resolvable:$true] %s154
          %157 = dma.hbm_to_vmem [thread:$0]  %s152, 512, %s155, %s143
        $region24: #{tpu_custom_call.1} parent=19 // pred_fallthru
          _
        // Predicated region
        $region25: #{tpu_custom_call.1} parent=19 // pred_check
          %p158 = pneg %p84
        $region26: #{tpu_custom_call.1} parent=19 // pred_check_branch
          %160 = sbr.rel (%p158) target = $region28
        $region27: #{tpu_custom_call.1} parent=19 // pred_region
          %s161 = sand.u32 %s74, 1
          %s162 = scalar_lea.sflag [#allocation9], %s161
          %s163 = sand.u32 %s74, 1
          %s164 = smul.addr %s163, 32
          %s165 = scalar_lea.vmem [#allocation8], %s164
          %s167 = ssub.s32 512, 512
          %168 = vsyncadd %s162, %s167
          %s169 = smul.addr %s17, 4
          %s170 = smul.addr %s169, 128
          %s171 = scalar_lea.hbm %s2, %s170
          %s173 = sshll.u32 %s165, 4
          %s174 = int_to_ptr.vmem [resolvable:$true] %s173
          %176 = dma.hbm_to_vmem [thread:$0]  %s171, 512, %s174, %s162
        $region28: #{tpu_custom_call.1} parent=19 // pred_fallthru
          _
      $region20: #{tpu_custom_call.1} parent=5 // pred_fallthru
        _
      %p177 = scmp.le.s32.totalorder 1, %s17
      %p178 = scmp.lt.s32.totalorder %s17, 4
      %p179 = pnand %p177, %p178
      %p180 = pneg %p179
      // Predicated region
      $region29: #{tpu_custom_call.1} parent=5 // pred_check
        _
      $region30: #{tpu_custom_call.1} parent=5 // pred_check_branch
        %182 = sbr.rel (%p179) target = $region32
      $region31: #{tpu_custom_call.1} parent=5 // pred_region
        %s183 = ssub.s32 %s17, 1
        // Predicated region
        $region33: #{tpu_custom_call.1} parent=31 // pred_check
          %p184 = pneg %p38
        $region34: #{tpu_custom_call.1} parent=31 // pred_check_branch
          %186 = sbr.rel (%p184) target = $region36
        $region35: #{tpu_custom_call.1} parent=31 // pred_region
          %187 = dma.done [#allocation5], 16
        $region36: #{tpu_custom_call.1} parent=31 // pred_fallthru
          _
        %s188 = sand.u32 %s51, 1
        %s189 = scalar_lea.sflag [#allocation4], %s188
        %s190 = sand.u32 %s51, 1
        %s191 = smul.addr %s190, 32
        %s192 = scalar_lea.vmem [#allocation7], %s191
        // Predicated region
        $region37: #{tpu_custom_call.1} parent=31 // pred_check
          %p193 = pneg %p64
        $region38: #{tpu_custom_call.1} parent=31 // pred_check_branch
          %195 = sbr.rel (%p193) target = $region40
        $region39: #{tpu_custom_call.1} parent=31 // pred_region
          %196 = dma.done %s189, 512
        $region40: #{tpu_custom_call.1} parent=31 // pred_fallthru
          _
        %s197 = sand.u32 %s77, 1
        %s198 = scalar_lea.sflag [#allocation9], %s197
        %s199 = sand.u32 %s77, 1
        %s200 = smul.addr %s199, 32
        %s201 = scalar_lea.vmem [#allocation8], %s200
        // Predicated region
        $region41: #{tpu_custom_call.1} parent=31 // pred_check
          %p202 = pneg %p90
        $region42: #{tpu_custom_call.1} parent=31 // pred_check_branch
          %204 = sbr.rel (%p202) target = $region44
        $region43: #{tpu_custom_call.1} parent=31 // pred_region
          %205 = dma.done %s198, 512
        $region44: #{tpu_custom_call.1} parent=31 // pred_fallthru
          _
        %206 = sfence
        %p207 = pneg %p38
        %p208 = pneg %p35
        %s209 = sand.u32 %s51, 1
        %s210 = scalar_lea.sflag [#allocation4], %s209
        %s211 = sand.u32 %s51, 1
        %s212 = smul.addr %s211, 32
        %s213 = scalar_lea.vmem [#allocation7], %s212
        %p214 = pneg %p64
        %p215 = pneg %p61
        %s216 = sand.u32 %s77, 1
        %s217 = scalar_lea.sflag [#allocation9], %s216
        %s218 = sand.u32 %s77, 1
        %s219 = smul.addr %s218, 32
        %s220 = scalar_lea.vmem [#allocation8], %s219
        %p221 = pneg %p90
        %p222 = pneg %p87
        %p223 = pneg %p111
        %p224 = pneg %p108
        %p225 = scmp.eq.s32.totalorder %s22, 0
        // Predicated region
        $region45: #{tpu_custom_call.1} parent=31 // pred_check
          %p226 = pneg %p225
        $region46: #{tpu_custom_call.1} parent=31 // pred_check_branch
          %228 = sbr.rel (%p226) target = $region48
        $region47: #{tpu_custom_call.1} parent=31 // pred_region
          %229 = vst [vmem:[#allocation2] sm:$0xff] 0.0
          %230 = vst [vmem:[#allocation2 + $0x8] sm:$0xff] 0.0
          %231 = vst [vmem:[#allocation2 + $0x10] sm:$0xff] 0.0
          %232 = vst [vmem:[#allocation2 + $0x18] sm:$0xff] 0.0
        $region48: #{tpu_custom_call.1} parent=31 // pred_fallthru
          _
        %v233 = vld [vmem:[%s192] sm:$0xff]
        %v234 = vld [vmem:[%s192 + $0x8] sm:$0xff]
        %v235 = vld [vmem:[%s192 + $0x10] sm:$0xff]
        %v236 = vld [vmem:[%s192 + $0x18] sm:$0xff]
        %v237 = vld [vmem:[%s201] sm:$0xff]
        %v238 = vld [vmem:[%s201 + $0x8] sm:$0xff]
        %v239 = vld [vmem:[%s201 + $0x10] sm:$0xff]
        %v240 = vld [vmem:[%s201 + $0x18] sm:$0xff]
        %v241 = vsub.f32 %v233, %v237
        %v242 = vsub.f32 %v234, %v238
        %v243 = vsub.f32 %v235, %v239
        %v244 = vsub.f32 %v236, %v240
        %v245 = vld [vmem:[#allocation2] sm:$0xff]
        %v246 = vld [vmem:[#allocation2 + $0x8] sm:$0xff]
        %v247 = vld [vmem:[#allocation2 + $0x10] sm:$0xff]
        %v248 = vld [vmem:[#allocation2 + $0x18] sm:$0xff]
        %s249 = sld [smem:[#allocation3 + %s22]]
        %v250 = vmul.f32 %v241, %v241
        %v251 = vmul.f32 %v242, %v242
        %v252 = vmul.f32 %v243, %v243
        %v253 = vmul.f32 %v244, %v244
        %v254 = vstv %s249
        %v255 = vmul.f32 %v254, %v250
        %v256 = vmul.f32 %v254, %v251
        %v257 = vmul.f32 %v254, %v252
        %v258 = vmul.f32 %v254, %v253
        %v259 = vadd.f32 %v245, %v255
        %v260 = vadd.f32 %v246, %v256
        %v261 = vadd.f32 %v247, %v257
        %v262 = vadd.f32 %v248, %v258
        %263 = vst [vmem:[#allocation2] sm:$0xff] %v259
        %264 = vst [vmem:[#allocation2 + $0x8] sm:$0xff] %v260
        %265 = vst [vmem:[#allocation2 + $0x10] sm:$0xff] %v261
        %266 = vst [vmem:[#allocation2 + $0x18] sm:$0xff] %v262
        %p267 = scmp.eq.s32.totalorder %s22, 2
        // Predicated region
        $region49: #{tpu_custom_call.1} parent=31 // pred_check
          %p268 = pneg %p267
        $region50: #{tpu_custom_call.1} parent=31 // pred_check_branch
          %270 = sbr.rel (%p268) target = $region52
        $region51: #{tpu_custom_call.1} parent=31 // pred_region
          %v271 = vld [vmem:[#allocation2] sm:$0xff]
          %v272 = vld [vmem:[#allocation2 + $0x8] sm:$0xff]
          %v273 = vld [vmem:[#allocation2 + $0x10] sm:$0xff]
          %v274 = vld [vmem:[#allocation2 + $0x18] sm:$0xff]
          %v275 = vadd.f32 %v271, %v272
          %v276 = vadd.f32 %v275, %v273
          %v277 = vadd.f32 %v276, %v274
          %278 = vadd.xlane.f32.xlu0 %v277
          %v279 = vpop.xlane.xlu0 %278
          %v280 = vrot.slane %v279, 4
          %v281 = vadd.f32 %v279, %v280
          %v282 = vrot.slane %v281, 2
          %v283 = vadd.f32 %v281, %v282
          %v284 = vrot.slane %v283, 1
          %v285 = vadd.f32 %v283, %v284
          %s286 = vtos %v285
          %s287 = scalar_lea.smem [#allocation10], 0
          %288 = sst [smem:[%s287]] %s286
        $region52: #{tpu_custom_call.1} parent=31 // pred_fallthru
          _
        // Predicated region
        $region53: #{tpu_custom_call.1} parent=31 // pred_check
          %p289 = pneg %p108
        $region54: #{tpu_custom_call.1} parent=31 // pred_check_branch
          %291 = sbr.rel (%p289) target = $region56
        $region55: #{tpu_custom_call.1} parent=31 // pred_region
          %s293 = ssub.s32 16, 16
          %294 = vsyncadd [#allocation6], %s293
          %297 = dma.smem_to_hbm [#allocation10], 16, %s3, [#allocation6]
        $region56: #{tpu_custom_call.1} parent=31 // pred_fallthru
          _
        // Predicated region
        $region57: #{tpu_custom_call.1} parent=31 // pred_check
          %p298 = pneg %p108
        $region58: #{tpu_custom_call.1} parent=31 // pred_check_branch
          %300 = sbr.rel (%p298) target = $region60
        $region59: #{tpu_custom_call.1} parent=31 // pred_region
          %301 = dma.done [#allocation6], 16
        $region60: #{tpu_custom_call.1} parent=31 // pred_fallthru
          _
        %302 = sfence
      $region32: #{tpu_custom_call.1} parent=5 // pred_fallthru
        _
      %p303 = scmp.le.s32.totalorder 2, %s17
      // Predicated region
      $region61: #{tpu_custom_call.1} parent=5 // pred_check
        %p304 = pneg %p303
      $region62: #{tpu_custom_call.1} parent=5 // pred_check_branch
        %306 = sbr.rel (%p304) target = $region64
      $region63: #{tpu_custom_call.1} parent=5 // pred_region
        %s307 = ssub.s32 %s17, 2
      $region64: #{tpu_custom_call.1} parent=5 // pred_fallthru
        _
    $region6: #{tpu_custom_call.1} parent=1 // loop_footer
      %s21 = sadd.s32 1, %s17
    $region7: #{tpu_custom_call.1} parent=1 // loop_footer_branch
      %16 = sbr.rel target = $region3
    $region8: #{tpu_custom_call.1} parent=1 // loop_exit
      _
    %308 = vsyncpa [#allocation4], 1
    %s309 = scalar_lea.sflag [#allocation4], 1
    %310 = vsyncpa %s309, 1
    %311 = vsyncpa [#allocation9], 1
    %s312 = scalar_lea.sflag [#allocation9], 1
    %313 = vsyncpa %s312, 1
    %314 = vsyncpa [#allocation5], 1
    %s315 = scalar_lea.sflag [#allocation5], 1
    %316 = vsyncpa %s315, 1
    %317 = vsyncpa [#allocation6], 1
    %s318 = scalar_lea.sflag [#allocation6], 1
    %319 = vsyncpa %s318, 1

</llo_original>
